<compile_context>
chip_gen: v5e
topology: v5e:2x2
jax: 0.10.0
libtpu: 0.0.40
codegen_flags: <defaults>
</compile_context>

<pallas_src>
import functools
import math

import jax
import jax.numpy as jnp
from jax.experimental import pallas as pl
from jax.experimental.pallas import tpu as pltpu

LN_EPS = 1e-12                      # BERT LayerNorm eps
VMEM_LIMIT = 48 * 1024 * 1024       # fits v5e/v6e/v7x scoped VMEM budgets


# ----------------------------- kernel helpers ------------------------------

def _layernorm(x, gamma, beta):
    mu = jnp.mean(x, axis=-1, keepdims=True)
    var = jnp.mean((x - mu) ** 2, axis=-1, keepdims=True)
    return (x - mu) * jax.lax.rsqrt(var + LN_EPS) * gamma + beta


def _gelu(x):
    # tanh-approximation GELU (EUP-friendly); HF BERT uses exact erf-GELU.
    c = math.sqrt(2.0 / math.pi)
    return 0.5 * x * (1.0 + jnp.tanh(c * (x + 0.044715 * x * x * x)))


# ------------------------------ Pallas kernels ------------------------------

def embed_ln_kernel(x_ref, g_ref, b_ref, o_ref):
    # x_ref: (1, S, H); g/b: (1, H)
    o_ref[0] = _layernorm(x_ref[0], g_ref[...], b_ref[...])


def encoder_layer_kernel(x_ref, mask_ref,
                         wq_ref, bq_ref, wk_ref, bk_ref, wv_ref, bv_ref,
                         wo_ref, bo_ref, g1_ref, be1_ref,
                         w1_ref, b1_ref, w2_ref, b2_ref, g2_ref, be2_ref,
                         o_ref, ctx_ref, *, num_heads):
    Bt, S, H = x_ref.shape
    dh = H // num_heads
    scale = 1.0 / math.sqrt(dh)

    x = x_ref[...].reshape(Bt * S, H)                 # f32 residual stream
    xb = x.astype(jnp.bfloat16)

    # QKV projections with M = Bt*S rows; bf16 operands, f32 accumulation.
    q = jnp.dot(xb, wq_ref[...], preferred_element_type=jnp.float32) + bq_ref[...]
    k = jnp.dot(xb, wk_ref[...], preferred_element_type=jnp.float32) + bk_ref[...]
    v = jnp.dot(xb, wv_ref[...], preferred_element_type=jnp.float32) + bv_ref[...]
    qb = q.astype(jnp.bfloat16)
    vb = v.astype(jnp.bfloat16)

    # Per-sequence attention; head outputs go straight into the ctx scratch
    # slab (no concatenate), K transposed once per sequence.
    for b in range(Bt):
        rows = slice(b * S, (b + 1) * S)
        kt = jnp.transpose(k[rows, :]).astype(jnp.bfloat16)      # (H, S)
        bias = (1.0 - mask_ref[b]) * -1e9                        # (1, S)
        for h in range(num_heads):
            cs = slice(h * dh, (h + 1) * dh)
            s = jnp.dot(qb[rows, cs], kt[cs, :],
                        preferred_element_type=jnp.float32) * scale + bias
            s = s - jnp.max(s, axis=-1, keepdims=True)
            p = jnp.exp(s)                                        # f32, EUP
            p = p * pl.reciprocal(jnp.sum(p, axis=-1, keepdims=True),
                                  approx=True)
            ctx_ref[rows, cs] = jnp.dot(p.astype(jnp.bfloat16), vb[rows, cs],
                                        preferred_element_type=jnp.float32)

    ctx = ctx_ref[...].astype(jnp.bfloat16)                       # (Bt*S, H)
    attn = jnp.dot(ctx, wo_ref[...],
                   preferred_element_type=jnp.float32) + bo_ref[...]
    h1 = _layernorm(x + attn, g1_ref[...], be1_ref[...])          # f32

    ff = jnp.dot(h1.astype(jnp.bfloat16), w1_ref[...],
                 preferred_element_type=jnp.float32) + b1_ref[...]
    ff = _gelu(ff)                                                # f32
    ff = jnp.dot(ff.astype(jnp.bfloat16), w2_ref[...],
                 preferred_element_type=jnp.float32) + b2_ref[...]
    out = _layernorm(h1 + ff, g2_ref[...], be2_ref[...])
    o_ref[...] = out.reshape(Bt, S, H)


def dense_tanh_kernel(x_ref, w_ref, b_ref, o_ref):
    # sentence-transformers Dense module: tanh(x @ W + b)
    o_ref[...] = jnp.tanh(
        jnp.dot(x_ref[...].astype(jnp.bfloat16), w_ref[...],
                preferred_element_type=jnp.float32) + b_ref[...])


# ------------------------------ wrappers -----------------------------------

def _rep_spec(shape):
    zeros = (0,) * len(shape)
    return pl.BlockSpec(tuple(shape), lambda i, _z=zeros: _z)


def embed_layernorm(x, gamma, beta):
    B, S, H = x.shape
    return pl.pallas_call(
        embed_ln_kernel,
        out_shape=jax.ShapeDtypeStruct((B, S, H), jnp.float32),
        grid=(B,),
        in_specs=[pl.BlockSpec((1, S, H), lambda i: (i, 0, 0)),
                  _rep_spec(gamma.shape), _rep_spec(beta.shape)],
        out_specs=pl.BlockSpec((1, S, H), lambda i: (i, 0, 0)),
        compiler_params=pltpu.CompilerParams(dimension_semantics=("parallel",)),
    )(x, gamma, beta)


def encoder_layer(x, mask, p, *, num_heads, block_b):
    B, S, H = x.shape
    block_b = max(1, min(block_b, B))
    assert B % block_b == 0, "batch must be divisible by block_b"
    weights = [p["wq"], p["bq"], p["wk"], p["bk"], p["wv"], p["bv"],
               p["wo"], p["bo"], p["ln1_g"], p["ln1_b"],
               p["w1"], p["b1"], p["w2"], p["b2"], p["ln2_g"], p["ln2_b"]]
    in_specs = ([pl.BlockSpec((block_b, S, H), lambda i: (i, 0, 0)),
                 pl.BlockSpec((block_b, 1, S), lambda i: (i, 0, 0))]
                + [_rep_spec(w.shape) for w in weights])
    return pl.pallas_call(
        functools.partial(encoder_layer_kernel, num_heads=num_heads),
        out_shape=jax.ShapeDtypeStruct((B, S, H), jnp.float32),
        grid=(B // block_b,),
        in_specs=in_specs,
        out_specs=pl.BlockSpec((block_b, S, H), lambda i: (i, 0, 0)),
        scratch_shapes=[pltpu.VMEM((block_b * S, H), jnp.float32)],
        compiler_params=pltpu.CompilerParams(
            dimension_semantics=("parallel",),
            vmem_limit_bytes=VMEM_LIMIT),
    )(x, mask, *weights)


def dense_tanh(x, w, b):
    B, H = x.shape
    Hout = w.shape[1]
    return pl.pallas_call(
        dense_tanh_kernel,
        out_shape=jax.ShapeDtypeStruct((B, Hout), jnp.float32),
        grid=(1,),
        in_specs=[pl.BlockSpec((B, H), lambda i: (0, 0)),
                  pl.BlockSpec((H, Hout), lambda i: (0, 0)),
                  pl.BlockSpec((1, Hout), lambda i: (0, 0))],
        out_specs=pl.BlockSpec((B, Hout), lambda i: (0, 0)),
    )(x, w, b)


# ------------------------- parameter initialization -------------------------

def init_params(key, *, vocab, max_pos, type_vocab, hidden, inter, layers):
    scale = 0.02

    def normal(k, shape, dtype=jnp.float32):
        return (scale * jax.random.normal(k, shape, dtype=jnp.float32)).astype(dtype)

    keys = iter(jax.random.split(key, 8 + 10 * layers))
    bf = jnp.bfloat16
    params = {
        "word_emb": normal(next(keys), (vocab, hidden)),
        "pos_emb": normal(next(keys), (max_pos, hidden)),
        "type_emb": normal(next(keys), (type_vocab, hidden)),
        "emb_ln_g": jnp.ones((1, hidden), jnp.float32),
        "emb_ln_b": jnp.zeros((1, hidden), jnp.float32),
        "dense_w": normal(next(keys), (hidden, hidden), bf),
        "dense_b": jnp.zeros((1, hidden), jnp.float32),
        "layers": [],
    }
    for _ in range(layers):
        lp = {
            "wq": normal(next(keys), (hidden, hidden), bf),
            "bq": jnp.zeros((1, hidden), jnp.float32),
            "wk": normal(next(keys), (hidden, hidden), bf),
            "bk": jnp.zeros((1, hidden), jnp.float32),
            "wv": normal(next(keys), (hidden, hidden), bf),
            "bv": jnp.zeros((1, hidden), jnp.float32),
            "wo": normal(next(keys), (hidden, hidden), bf),
            "bo": jnp.zeros((1, hidden), jnp.float32),
            "ln1_g": jnp.ones((1, hidden), jnp.float32),
            "ln1_b": jnp.zeros((1, hidden), jnp.float32),
            "w1": normal(next(keys), (hidden, inter), bf),
            "b1": jnp.zeros((1, inter), jnp.float32),
            "w2": normal(next(keys), (inter, hidden), bf),
            "b2": jnp.zeros((1, hidden), jnp.float32),
            "ln2_g": jnp.ones((1, hidden), jnp.float32),
            "ln2_b": jnp.zeros((1, hidden), jnp.float32),
        }
        params["layers"].append(lp)
    return params


# ------------------------------ forward pass --------------------------------

def labse_forward(params, input_ids, attention_mask, *, num_heads, block_b=2):
    B, S = input_ids.shape
    # Embeddings (gather = glue in plain JAX); token_type_ids are all zeros.
    emb = (params["word_emb"][input_ids]
           + params["pos_emb"][jnp.arange(S)][None, :, :]
           + params["type_emb"][0][None, None, :])
    x = embed_layernorm(emb, params["emb_ln_g"], params["emb_ln_b"])

    mask = attention_mask.astype(jnp.float32).reshape(B, 1, S)
    for lp in params["layers"]:
        x = encoder_layer(x, mask, lp, num_heads=num_heads, block_b=block_b)

    cls = x[:, 0, :]                                   # CLS pooling (ST Pooling)
    return dense_tanh(cls, params["dense_w"], params["dense_b"])  # ST Dense(tanh)


# ---------------------------------- main -------------------------------------

if __name__ == "__main__":
    B, S = 2, 8
    VOCAB, MAX_POS, TYPE_VOCAB = 100, 16, 2
    HIDDEN, HEADS, INTER, LAYERS = 32, 4, 128, 2

    key = jax.random.PRNGKey(0)
    k_params, k_ids = jax.random.split(key)

    params = init_params(k_params, vocab=VOCAB, max_pos=MAX_POS,
                         type_vocab=TYPE_VOCAB, hidden=HIDDEN,
                         inter=INTER, layers=LAYERS)

    input_ids = jax.random.randint(k_ids, (B, S), 0, VOCAB, dtype=jnp.int32)
    # Deterministic padding mask: second sequence has its last 3 tokens padded.
    attention_mask = jnp.array(
        [[1, 1, 1, 1, 1, 1, 1, 1],
         [1, 1, 1, 1, 1, 0, 0, 0]], dtype=jnp.int32)

    sentence_embedding = labse_forward(params, input_ids, attention_mask,
                                       num_heads=HEADS, block_b=2)
    sentence_embedding = jax.block_until_ready(sentence_embedding)

    assert sentence_embedding.shape == (B, HIDDEN)
    assert bool(jnp.all(jnp.isfinite(sentence_embedding)))
    print("KERNEL_OK")
</pallas_src>

<mosaic_0001>
module attributes {stable_mosaic.version = 11 : i64} {
  func.func @embed_ln_kernel(%arg0: i32, %arg1: memref<1x8x32xf32, #tpu.memory_space<vmem>>, %arg2: memref<1x32xf32, #tpu.memory_space<vmem>>, %arg3: memref<1x32xf32, #tpu.memory_space<vmem>>, %arg4: memref<1x8x32xf32, #tpu.memory_space<vmem>>) attributes {dimension_semantics = [#tpu.dimension_semantics<parallel>], iteration_bounds = array<i64: 2>, scalar_prefetch = 0 : i64, scratch_operands = 0 : i64, tpu.core_type = #tpu.core_type<tc>, window_params = [{transform_indices = @transform_0, window_bounds = array<i64: 1, 8, 32>}, {pipeline_mode = #tpu.pipeline_mode<synchronous>, transform_indices = @transform_1, window_bounds = array<i64: 1, 32>}, {pipeline_mode = #tpu.pipeline_mode<synchronous>, transform_indices = @transform_2, window_bounds = array<i64: 1, 32>}, {transform_indices = @transform_3, window_bounds = array<i64: 1, 8, 32>}]} {
    %c0 = arith.constant 0 : index
    %c0_0 = arith.constant 0 : index
    %c0_1 = arith.constant 0 : index
    %0 = vector.load %arg1[%c0, %c0_0, %c0_1] : memref<1x8x32xf32, #tpu.memory_space<vmem>>, vector<1x8x32xf32>
    %1 = vector.shape_cast %0 : vector<1x8x32xf32> to vector<8x32xf32>
    %c0_2 = arith.constant 0 : index
    %c0_3 = arith.constant 0 : index
    %2 = vector.load %arg2[%c0_2, %c0_3] : memref<1x32xf32, #tpu.memory_space<vmem>>, vector<1x32xf32>
    %c0_4 = arith.constant 0 : index
    %c0_5 = arith.constant 0 : index
    %3 = vector.load %arg3[%c0_4, %c0_5] : memref<1x32xf32, #tpu.memory_space<vmem>>, vector<1x32xf32>
    %cst = arith.constant dense<0.000000e+00> : vector<8xf32>
    %4 = vector.multi_reduction <add>, %1, %cst [1] : vector<8x32xf32> to vector<8xf32>
    %5 = vector.shape_cast %4 : vector<8xf32> to vector<8x1xf32>
    %cst_6 = arith.constant 3.200000e+01 : f32
    %6 = vector.broadcast %cst_6 : f32 to vector<8x1xf32>
    %7 = arith.divf %5, %6 : vector<8x1xf32>
    %8 = vector.broadcast %7 : vector<8x1xf32> to vector<8x32xf32>
    %9 = arith.subf %1, %8 : vector<8x32xf32>
    %10 = arith.mulf %9, %9 : vector<8x32xf32>
    %cst_7 = arith.constant dense<0.000000e+00> : vector<8xf32>
    %11 = vector.multi_reduction <add>, %10, %cst_7 [1] : vector<8x32xf32> to vector<8xf32>
    %12 = vector.shape_cast %11 : vector<8xf32> to vector<8x1xf32>
    %cst_8 = arith.constant 3.200000e+01 : f32
    %13 = vector.broadcast %cst_8 : f32 to vector<8x1xf32>
    %14 = arith.divf %12, %13 : vector<8x1xf32>
    %15 = vector.broadcast %7 : vector<8x1xf32> to vector<8x32xf32>
    %16 = arith.subf %1, %15 : vector<8x32xf32>
    %cst_9 = arith.constant 9.99999996E-13 : f32
    %17 = vector.broadcast %cst_9 : f32 to vector<8x1xf32>
    %18 = arith.addf %14, %17 : vector<8x1xf32>
    %19 = math.rsqrt %18 : vector<8x1xf32>
    %20 = vector.broadcast %19 : vector<8x1xf32> to vector<8x32xf32>
    %21 = arith.mulf %16, %20 : vector<8x32xf32>
    %22 = vector.broadcast %2 : vector<1x32xf32> to vector<8x32xf32>
    %23 = arith.mulf %21, %22 : vector<8x32xf32>
    %24 = vector.broadcast %3 : vector<1x32xf32> to vector<8x32xf32>
    %25 = arith.addf %23, %24 : vector<8x32xf32>
    %c0_10 = arith.constant 0 : index
    %c0_11 = arith.constant 0 : index
    %c0_12 = arith.constant 0 : index
    %26 = vector.load %arg4[%c0_10, %c0_11, %c0_12] : memref<1x8x32xf32, #tpu.memory_space<vmem>>, vector<1x8x32xf32>
    %27 = vector.shape_cast %26 : vector<1x8x32xf32> to vector<8x32xf32>
    %28 = vector.shape_cast %25 : vector<8x32xf32> to vector<1x8x32xf32>
    tpu.vector_store %arg4[%c0_10, %c0_11, %c0_12], %28 {strides = array<i32>} : memref<1x8x32xf32, #tpu.memory_space<vmem>>, vector<1x8x32xf32>,
    return
  }
  func.func @transform_0(%arg0: i32) -> (i32, i32, i32) {
    %c0_i32 = arith.constant 0 : i32
    %c0_i32_0 = arith.constant 0 : i32
    %c0_i32_1 = arith.constant 0 : i32
    return %arg0, %c0_i32, %c0_i32_0 : i32, i32, i32
  }
  func.func @transform_1(%arg0: i32) -> (i32, i32) {
    %c0_i32 = arith.constant 0 : i32
    %c0_i32_0 = arith.constant 0 : i32
    %c0_i32_1 = arith.constant 0 : i32
    return %c0_i32, %c0_i32_0 : i32, i32
  }
  func.func @transform_2(%arg0: i32) -> (i32, i32) {
    %c0_i32 = arith.constant 0 : i32
    %c0_i32_0 = arith.constant 0 : i32
    %c0_i32_1 = arith.constant 0 : i32
    return %c0_i32, %c0_i32_0 : i32, i32
  }
  func.func @transform_3(%arg0: i32) -> (i32, i32, i32) {
    %c0_i32 = arith.constant 0 : i32
    %c0_i32_0 = arith.constant 0 : i32
    %c0_i32_1 = arith.constant 0 : i32
    return %arg0, %c0_i32, %c0_i32_0 : i32, i32, i32
  }
}

</mosaic_0001>

<llo_original>
// kernel: tpu_custom_call.1
$region0: #{tpu_custom_call.1}
  #allocation0 [shape = 'u32[]', space=smem, size = 0x4, offset = 0x4, fixed_abs, tag = 'smem constant byte address 0x4 - core index']
  #allocation1 [shape = 'u32[72,128]{1,0:T(1,128)}', space=vmem, size = 0x9000, scoped, tag = 'internal scratch']
  %s0 = inlined_call_operand.hbm [shape: f32[2,8,32], index: 0, kind: input, shape index: {}]
  %s1 = inlined_call_operand.hbm [shape: f32[1,32], index: 1, kind: input, shape index: {}]
  %s2 = inlined_call_operand.vmem [shape: f32[1,32], index: 2, kind: input, shape index: {}]
  %s3 = inlined_call_operand.hbm [shape: f32[2,8,32], index: 3, kind: output, shape index: {}]
  %s4 = sld [smem:[#allocation0]]
  $region53: #{tpu_custom_call.1} parent=0
    _
  %s6 = ssub.s32 1, %s4
  %s7 = scalar_select 0, %s6, %s4
  $region1: #{tpu_custom_call.1} parent=0
    #allocation2 [shape = 'u8[8192]{0}', space=vmem, size = 0x2000, scoped, tag = 'input window, operand 0']
    #allocation3 [shape = 's32[2]{0}', space=sflag, size = 0x8, scoped, tag = 'scoped memory for tpu_custom_call.1']
    #allocation4 [shape = 's32[2]{0}', space=sflag, size = 0x8, scoped, tag = 'scoped memory for tpu_custom_call.1']
    #allocation5 [shape = 'u8[512]{0}', space=vmem, size = 0x400, scoped, tag = 'input window, operand 1, single buffered']
    #allocation6 [shape = 's32[1]{0}', space=sflag, size = 0x4, scoped, tag = 'scoped memory for tpu_custom_call.1']
    #allocation7 [shape = 'u8[8192]{0}', space=vmem, size = 0x2000, scoped, tag = 'output window, operand 0']
    %8 = vsyncpa [#allocation3], 0
    %s9 = scalar_lea.sflag [#allocation3], 1
    %10 = vsyncpa %s9, 0
    %11 = vsyncpa [#allocation6], 0
    %12 = vsyncpa [#allocation4], 0
    %s13 = scalar_lea.sflag [#allocation4], 1
    %14 = vsyncpa %s13, 0
    loop: start=0, step=1, limit=4
    $region2: #{tpu_custom_call.1} parent=1 // loop_pre_header
      _
    $region3: #{tpu_custom_call.1} parent=1 // loop_header
      %s16 = sphi 0, %s20
      %p17 = scmp.ge.s32.totalorder %s16, 4
      %s26 = sphi 0, %s28
      %s29 = sphi 0, %s26
      %s30 = sphi 0, %s29
      %s46 = sphi 0, %s30
      %s50 = sphi 0, %s50
      %s52 = sphi 0, %s50
      %s53 = sphi 0, %s52
      %s67 = sphi 0, %s53
      %s71 = sphi 0, %s71
      %s73 = sphi 0, %s71
      %s74 = sphi 0, %s73
      %s88 = sphi 0, %s74
      %s94 = sphi 0, %s96
      %s97 = sphi 0, %s94
      %s98 = sphi 0, %s97
      %s114 = sphi 0, %s98
    $region4: #{tpu_custom_call.1} parent=1 // loop_header_branch
      %19 = sbr.rel (%p17) target = $region8
    $region5: #{tpu_custom_call.1} parent=1 // loop_body
      %s21 = ssub.s32 %s16, 1
      %s22 = ssub.s32 %s16, 2
      %s23 = sadd.s32 %s16, 1
      %s24 = ssub.s32 %s16, %s23
      %p25 = scmp.eq.s32.totalorder %s24, 0
      %s27 = sadd.s32 %s26, 1
      %s28 = scalar_select %p25, %s26, %s27
      %p31 = pneg %p25
      %p32 = scmp.eq.s32.totalorder %s16, 1
      %p33 = por %p31, %p32
      %p34 = scmp.ne.s32.totalorder %s26, %s29
      %p35 = scmp.eq.s32.totalorder %s16, 0
      %p36 = por %p34, %p35
      %p37 = scmp.ne.s32.totalorder %s26, %s29
      %p38 = scmp.eq.s32.totalorder %s21, 1
      %p39 = por %p37, %p38
      %p40 = scmp.ne.s32.totalorder %s29, %s30
      %p41 = scmp.eq.s32.totalorder %s21, 0
      %p42 = por %p40, %p41
      %p43 = scmp.ne.s32.totalorder %s29, %s30
      %p44 = scmp.eq.s32.totalorder %s22, 1
      %p45 = por %p43, %p44
      %p47 = scmp.ne.s32.totalorder %s30, %s46
      %p48 = scmp.eq.s32.totalorder %s22, 0
      %p49 = por %p47, %p48
      %s51 = sadd.s32 %s50, 1
      %p54 = scmp.eq.s32.totalorder %s16, 1
      %p55 = scmp.ne.s32.totalorder %s50, %s52
      %p56 = scmp.eq.s32.totalorder %s16, 0
      %p57 = por %p55, %p56
      %p58 = scmp.ne.s32.totalorder %s50, %s52
      %p59 = scmp.eq.s32.totalorder %s21, 1
      %p60 = por %p58, %p59
      %p61 = scmp.ne.s32.totalorder %s52, %s53
      %p62 = scmp.eq.s32.totalorder %s21, 0
      %p63 = por %p61, %p62
      %p64 = scmp.ne.s32.totalorder %s52, %s53
      %p65 = scmp.eq.s32.totalorder %s22, 1
      %p66 = por %p64, %p65
      %p68 = scmp.ne.s32.totalorder %s53, %s67
      %p69 = scmp.eq.s32.totalorder %s22, 0
      %p70 = por %p68, %p69
      %s72 = sadd.s32 %s71, 1
      %p75 = scmp.eq.s32.totalorder %s16, 1
      %p76 = scmp.ne.s32.totalorder %s71, %s73
      %p77 = scmp.eq.s32.totalorder %s16, 0
      %p78 = por %p76, %p77
      %p79 = scmp.ne.s32.totalorder %s71, %s73
      %p80 = scmp.eq.s32.totalorder %s21, 1
      %p81 = por %p79, %p80
      %p82 = scmp.ne.s32.totalorder %s73, %s74
      %p83 = scmp.eq.s32.totalorder %s21, 0
      %p84 = por %p82, %p83
      %p85 = scmp.ne.s32.totalorder %s73, %s74
      %p86 = scmp.eq.s32.totalorder %s22, 1
      %p87 = por %p85, %p86
      %p89 = scmp.ne.s32.totalorder %s74, %s88
      %p90 = scmp.eq.s32.totalorder %s22, 0
      %p91 = por %p89, %p90
      %s92 = ssub.s32 %s16, %s23
      %p93 = scmp.eq.s32.totalorder %s92, 0
      %s95 = sadd.s32 %s94, 1
      %s96 = scalar_select %p93, %s94, %s95
      %p99 = pneg %p93
      %p100 = scmp.eq.s32.totalorder %s16, 1
      %p101 = por %p99, %p100
      %p102 = scmp.ne.s32.totalorder %s94, %s97
      %p103 = scmp.eq.s32.totalorder %s16, 0
      %p104 = por %p102, %p103
      %p105 = scmp.ne.s32.totalorder %s94, %s97
      %p106 = scmp.eq.s32.totalorder %s21, 1
      %p107 = por %p105, %p106
      %p108 = scmp.ne.s32.totalorder %s97, %s98
      %p109 = scmp.eq.s32.totalorder %s21, 0
      %p110 = por %p108, %p109
      %p111 = scmp.ne.s32.totalorder %s97, %s98
      %p112 = scmp.eq.s32.totalorder %s22, 1
      %p113 = por %p111, %p112
      %p115 = scmp.ne.s32.totalorder %s98, %s114
      %p116 = scmp.eq.s32.totalorder %s22, 0
      %p117 = por %p115, %p116
      %p118 = scmp.le.s32.totalorder 1, %s16
      %p119 = scmp.lt.s32.totalorder %s16, 3
      %p120 = pnand %p118, %p119
      %p121 = pneg %p120
      // Predicated region
      $region9: #{tpu_custom_call.1} parent=5 // pred_check
        _
      $region10: #{tpu_custom_call.1} parent=5 // pred_check_branch
        %123 = sbr.rel (%p120) target = $region12
      $region11: #{tpu_custom_call.1} parent=5 // pred_region
        %s124 = ssub.s32 %s16, 1
        // Predicated region
        $region13: #{tpu_custom_call.1} parent=11 // pred_check
          %p125 = pneg %p63
        $region14: #{tpu_custom_call.1} parent=11 // pred_check_branch
          %127 = sbr.rel (%p125) target = $region16
        $region15: #{tpu_custom_call.1} parent=11 // pred_region
          %129 = vsyncadd [#allocation6], 0
          %s131 = sshll.u32 %s1, 4
          %s132 = int_to_ptr.hbm [resolvable:$true] %s131
          %s133 = sshll.u32 [#allocation5], 4
          %s134 = int_to_ptr.vmem [resolvable:$true] %s133
          %136 = dma.hbm_to_vmem [thread:$0]  %s132, 16, %s134, [#allocation6]
        $region16: #{tpu_custom_call.1} parent=11 // pred_fallthru
          _
        // Predicated region
        $region17: #{tpu_custom_call.1} parent=11 // pred_check
          %p137 = pneg %p84
        $region18: #{tpu_custom_call.1} parent=11 // pred_check_branch
          %139 = sbr.rel (%p137) target = $region20
        $region19: #{tpu_custom_call.1} parent=11 // pred_region
          _
        $region20: #{tpu_custom_call.1} parent=11 // pred_fallthru
          _
      $region12: #{tpu_custom_call.1} parent=5 // pred_fallthru
        _
      %p140 = scmp.lt.s32.totalorder %s16, 2
      // Predicated region
      $region21: #{tpu_custom_call.1} parent=5 // pred_check
        %p141 = pneg %p140
      $region22: #{tpu_custom_call.1} parent=5 // pred_check_branch
        %143 = sbr.rel (%p141) target = $region24
      $region23: #{tpu_custom_call.1} parent=5 // pred_region
        // Predicated region
        $region25: #{tpu_custom_call.1} parent=23 // pred_check
          %p144 = pneg %p36
        $region26: #{tpu_custom_call.1} parent=23 // pred_check_branch
          %146 = sbr.rel (%p144) target = $region28
        $region27: #{tpu_custom_call.1} parent=23 // pred_region
          %s147 = sand.u32 %s26, 1
          %s148 = scalar_lea.sflag [#allocation3], %s147
          %s149 = sand.u32 %s26, 1
          %s150 = smul.addr %s149, 8
          %s151 = scalar_lea.vmem [#allocation2], %s150
          %153 = vsyncadd %s148, 0
          %s154 = smul.addr %s16, 8
          %s155 = scalar_lea.hbm %s0, %s154
          %s157 = sshll.u32 %s155, 4
          %s158 = int_to_ptr.hbm [resolvable:$true] %s157
          %s159 = sshll.u32 %s151, 4
          %s160 = int_to_ptr.vmem [resolvable:$true] %s159
          %162 = dma.hbm_to_vmem [thread:$0]  %s158, 128, %s160, %s148
        $region28: #{tpu_custom_call.1} parent=23 // pred_fallthru
          _
      $region24: #{tpu_custom_call.1} parent=5 // pred_fallthru
        _
      %p163 = scmp.le.s32.totalorder 1, %s16
      %p164 = scmp.lt.s32.totalorder %s16, 3
      %p165 = pnand %p163, %p164
      %p166 = pneg %p165
      // Predicated region
      $region29: #{tpu_custom_call.1} parent=5 // pred_check
        _
      $region30: #{tpu_custom_call.1} parent=5 // pred_check_branch
        %168 = sbr.rel (%p165) target = $region32
      $region31: #{tpu_custom_call.1} parent=5 // pred_region
        %s169 = ssub.s32 %s16, 1
        %s170 = sand.u32 %s29, 1
        %s171 = scalar_lea.sflag [#allocation3], %s170
        %s172 = sand.u32 %s29, 1
        %s173 = smul.addr %s172, 8
        %s174 = scalar_lea.vmem [#allocation2], %s173
        // Predicated region
        $region33: #{tpu_custom_call.1} parent=31 // pred_check
          %p175 = pneg %p42
        $region34: #{tpu_custom_call.1} parent=31 // pred_check_branch
          %177 = sbr.rel (%p175) target = $region36
        $region35: #{tpu_custom_call.1} parent=31 // pred_region
          %179 = dma.done %s171, 128
        $region36: #{tpu_custom_call.1} parent=31 // pred_fallthru
          _
        // Predicated region
        $region37: #{tpu_custom_call.1} parent=31 // pred_check
          %p180 = pneg %p63
        $region38: #{tpu_custom_call.1} parent=31 // pred_check_branch
          %182 = sbr.rel (%p180) target = $region40
        $region39: #{tpu_custom_call.1} parent=31 // pred_region
          %184 = dma.done [#allocation6], 16
        $region40: #{tpu_custom_call.1} parent=31 // pred_fallthru
          _
        %s185 = sand.u32 %s29, 1
        %s186 = scalar_lea.sflag [#allocation3], %s185
        %s187 = sand.u32 %s29, 1
        %s188 = smul.addr %s187, 8
        %s189 = scalar_lea.vmem [#allocation2], %s188
        %p190 = pneg %p42
        %p191 = pneg %p39
        %p192 = pneg %p63
        %p193 = pneg %p60
        %p194 = pneg %p84
        %p195 = pneg %p81
        %p196 = pneg %p110
        %p197 = pneg %p107
        %s198 = sand.u32 %s97, 1
        %s199 = scalar_lea.sflag [#allocation4], %s198
        %s200 = sand.u32 %s97, 1
        %s201 = smul.addr %s200, 8
        %s202 = scalar_lea.vmem [#allocation7], %s201
        %v203 = vld [vmem:[%s174] sm:$0xff]
        %v204 = vld [vmem:[#allocation5] sm:$0x1]
        %v205 = vld [vmem:[%s2] sm:$0x1]
        %vm206 = vcmask 261120
        %v207 = vsel %vm206, %v203, 0.0
        %208 = vadd.xlane.f32.xlu0 %v207
        %v209 = vpop.xlane.xlu0 %208
        %v210 = vrcp.pop 32.0
        %v211 = vmul.f32 32.0, %v210
        %v212 = vsub.f32 1.0, %v211
        %v213 = vmul.f32 %v210, %v212
        %v214 = vadd.f32 %v210, %v213
        %vm215 = vweird.f32 %v210
        %v216 = vsel %vm215, %v210, %v214
        %v217 = vmul.f32 %v209, %v216
        %v218 = vsub.f32 %v203, %v217
        %v219 = vmul.f32 %v218, %v218
        %v220 = vsel %vm206, %v219, 0.0
        %221 = vadd.xlane.f32.xlu0 %v220
        %v222 = vpop.xlane.xlu0 %221
        %v223 = vmul.f32 %v222, %v216
        %v224 = vadd.f32 %v223, 1e-12
        %v225 = vrsqrt.pop %v224
        %v226 = vmul.f32 %v225, %v224
        %v227 = vmul.f32 %v226, %v225
        %v228 = vmul.f32 0.5, %v227
        %v229 = vsub.f32 1.5, %v228
        %v230 = vmul.f32 %v225, %v229
        %vm231 = vweird.f32 %v224
        %vm232 = vweird.f32 %v225
        %vm233 = vmor %vm231, %vm232
        %v234 = vsel %vm233, %v225, %v230
        %v235 = vmul.f32 %v218, %v234
        %v237 = vperm.slane %v204, 0
        %v239 = vmul.f32 %v235, %v237
        %v241 = vperm.slane %v205, 0
        %v243 = vadd.f32 %v239, %v241
        %244 = vst.msk [vmem:[%s202] sm:$0xff] %vm206, %v243
        %s245 = sand.u32 %s97, 1
        %s246 = scalar_lea.sflag [#allocation4], %s245
        %s247 = sand.u32 %s97, 1
        %s248 = smul.addr %s247, 8
        %s249 = scalar_lea.vmem [#allocation7], %s248
        // Predicated region
        $region41: #{tpu_custom_call.1} parent=31 // pred_check
          %p250 = pneg %p107
        $region42: #{tpu_custom_call.1} parent=31 // pred_check_branch
          %252 = sbr.rel (%p250) target = $region44
        $region43: #{tpu_custom_call.1} parent=31 // pred_region
          %254 = vsyncadd %s246, 0
          %s255 = smul.addr %s21, 8
          %s256 = scalar_lea.hbm %s3, %s255
          %s258 = sshll.u32 %s249, 4
          %s259 = int_to_ptr.vmem [resolvable:$true] %s258
          %s260 = sshll.u32 %s256, 4
          %s261 = int_to_ptr.hbm [resolvable:$true] %s260
          %263 = dma.vmem_to_hbm [thread:$0]  %s259, 128, %s261, %s246
        $region44: #{tpu_custom_call.1} parent=31 // pred_fallthru
          _
      $region32: #{tpu_custom_call.1} parent=5 // pred_fallthru
        _
      %p264 = scmp.le.s32.totalorder 2, %s16
      // Predicated region
      $region45: #{tpu_custom_call.1} parent=5 // pred_check
        %p265 = pneg %p264
      $region46: #{tpu_custom_call.1} parent=5 // pred_check_branch
        %267 = sbr.rel (%p265) target = $region48
      $region47: #{tpu_custom_call.1} parent=5 // pred_region
        %s268 = ssub.s32 %s16, 2
        // Predicated region
        $region49: #{tpu_custom_call.1} parent=47 // pred_check
          %p269 = pneg %p113
        $region50: #{tpu_custom_call.1} parent=47 // pred_check_branch
          %271 = sbr.rel (%p269) target = $region52
        $region51: #{tpu_custom_call.1} parent=47 // pred_region
          %s272 = sand.u32 %s98, 1
          %s273 = scalar_lea.sflag [#allocation4], %s272
          %s274 = sand.u32 %s98, 1
          %s275 = smul.addr %s274, 8
          %s276 = scalar_lea.vmem [#allocation7], %s275
          %278 = dma.done %s273, 128
        $region52: #{tpu_custom_call.1} parent=47 // pred_fallthru
          _
      $region48: #{tpu_custom_call.1} parent=5 // pred_fallthru
        _
    $region6: #{tpu_custom_call.1} parent=1 // loop_footer
      %s20 = sadd.s32 1, %s16
    $region7: #{tpu_custom_call.1} parent=1 // loop_footer_branch
      %15 = sbr.rel target = $region3
    $region8: #{tpu_custom_call.1} parent=1 // loop_exit
      _
    %279 = vsyncpa [#allocation3], 1
    %s280 = scalar_lea.sflag [#allocation3], 1
    %281 = vsyncpa %s280, 1
    %282 = vsyncpa [#allocation6], 1
    %283 = vsyncpa [#allocation4], 1
    %s284 = scalar_lea.sflag [#allocation4], 1
    %285 = vsyncpa %s284, 1

</llo_original>
